<compile_context>
chip_gen: v5e
topology: v5e:2x2
jax: 0.10.0
libtpu: 0.0.40
codegen_flags: <defaults>
</compile_context>

<pallas_src>
import math

import jax
import jax.numpy as jnp
from jax.experimental import pallas as pl
from jax.experimental.pallas import tpu as pltpu


_INV_SQRT2 = 0.7071067811865476


def _gelu_exact(x):
    # PyTorch nn.GELU() default = exact erf GELU (f32). Constant multiply, not divide.
    return 0.5 * x * (1.0 + jax.lax.erf(x * _INV_SQRT2))


# ----------------------------- kernels -----------------------------

def ff_resident_kernel(x_ref, w1_ref, b1_ref, w2_ref, b2_ref, o_ref):
    """Weights VMEM-resident (constant index_map): grid = (row tiles,)."""
    h = jnp.dot(x_ref[...], w1_ref[...], preferred_element_type=jnp.float32)
    h = _gelu_exact(h + b1_ref[...])
    # Dropout(p=0.0) is identity (eval semantics).
    o = jnp.dot(h.astype(w2_ref.dtype), w2_ref[...], preferred_element_type=jnp.float32)
    o_ref[...] = (o + b2_ref[...]).astype(o_ref.dtype)


def ff_stream_kernel(x_ref, w1_ref, b1_ref, w2_ref, b2_ref, o_ref, acc_ref):
    """Hidden dim streamed as chunks over grid axis 1 ('arbitrary'); f32 accumulator."""
    j = pl.program_id(1)

    @pl.when(j == 0)
    def _():
        acc_ref[...] = jnp.zeros_like(acc_ref)

    h = jnp.dot(x_ref[...], w1_ref[...], preferred_element_type=jnp.float32)
    h = _gelu_exact(h + b1_ref[...])
    # Dropout(p=0.0) is identity (eval semantics).
    # TODO(synk): training-mode dropout (p>0) would need pltpu.prng_seed/prng_random_bits.
    acc_ref[...] += jnp.dot(h.astype(w2_ref.dtype), w2_ref[...],
                            preferred_element_type=jnp.float32)

    @pl.when(j == pl.num_programs(1) - 1)
    def _():
        o_ref[...] = (acc_ref[...] + b2_ref[...]).astype(o_ref.dtype)


# ----------------------------- wrapper helpers -----------------------------

def _round_up(a, b):
    return ((a + b - 1) // b) * b


def _vmem_capacity_and_row_tile_target():
    """(physical VMEM bytes, target row tile) for the local TPU generation."""
    vmem_cap = None
    try:
        vmem_cap = int(pltpu.get_tpu_info().vmem_capacity_bytes)
    except Exception:
        vmem_cap = None
    kind = ""
    try:
        kind = jax.devices()[0].device_kind.lower()
    except Exception:
        pass
    if "v7" in kind:
        tm_target, default_cap = 512, 64 << 20      # 64 MiB physical -> keep headroom
    elif "v6" in kind:
        tm_target, default_cap = 1024, 128 << 20    # ~714 FLOPs/byte roofline -> big row tile
    elif "v5" in kind:
        tm_target, default_cap = 512, 128 << 20     # already ~compute-bound at 256-512
    else:
        tm_target, default_cap = 512, 64 << 20      # conservative default
    if vmem_cap is None:
        vmem_cap = default_cap
    return vmem_cap, tm_target


def _pick_row_tile(n, target):
    """Row tile: multiple of 8, <= n rounded up; prefer a divisor of n near target."""
    n8 = _round_up(max(n, 1), 8)
    target = max(8, (target // 8) * 8)
    if n8 <= target:
        return n8
    if n % 8 == 0:
        t = target
        while t >= max(8, target // 2):
            if n % t == 0:
                return t
            t -= 8
    return target


def _pick_hidden_tile(total, target, granularity=128):
    """Largest multiple of `granularity` <= target dividing `total`; else full extent."""
    if total <= target or total % granularity != 0:
        return total
    t = (target // granularity) * granularity
    while t >= granularity:
        if total % t == 0:
            return t
        t -= granularity
    return total


def _stream_need_bytes(tm, e, th, x_isz, o_isz, w_isz):
    return (2 * tm * e * x_isz          # x tile (double-buffered, bf16)
            + 2 * tm * e * o_isz        # out tile (double-buffered)
            + 4 * e * th * w_isz        # W1 + W2 hidden chunks (double-buffered)
            + tm * e * 4                # f32 accumulator scratch
            + tm * th * (4 + w_isz)     # h intermediate (f32) + bf16 cast
            + 4 * 8 * (th + e) * 4)     # biases (sublane-padded, double-buffered)


def _resident_need_bytes(tm, e, h, x_isz, o_isz, w_isz):
    return (2 * tm * e * x_isz
            + 2 * tm * e * o_isz
            + 4 * e * h * w_isz         # both full weights (counted double-buffered)
            + tm * h * (4 + w_isz)      # h intermediate (f32) + bf16 cast
            + tm * e * 4                # f32 second-matmul result
            + 4 * 8 * (h + e) * 4)


# ----------------------------- public entry point -----------------------------

def feedforward(x, w1, b1, w2, b2, *, tm=None, th=512,
                matmul_dtype=jnp.bfloat16, residency="auto"):
    """x: (B, S, E). w1: (E, H), b1: (H,), w2: (H, E), b2: (E,). Returns (B, S, E).

    Computes GELU(x @ W1 + b1) @ W2 + b2 (PyTorch Linear with weights pre-transposed).
    residency: "auto" | "resident" | "stream".
    """
    B, S, E = x.shape
    E_in, H = w1.shape
    assert E_in == E and w2.shape == (H, E) and b1.shape == (H,) and b2.shape == (E,)
    N = B * S

    vmem_cap, tm_target = _vmem_capacity_and_row_tile_target()
    if tm is not None:
        tm_target = tm
    budget = int(0.75 * vmem_cap)

    # Lane-dense E: pad to a multiple of 128 (zero-padded weights/bias -> identical result).
    E_pad = _round_up(E, 128)

    x_isz = jnp.dtype(matmul_dtype).itemsize
    w_isz = jnp.dtype(matmul_dtype).itemsize
    o_isz = jnp.dtype(x.dtype).itemsize

    th_eff = _pick_hidden_tile(H, th)

    # Weight residency decision (weights take at most half the budget).
    if residency == "auto":
        use_resident = (4 * E_pad * H * w_isz) <= budget // 2
    else:
        use_resident = (residency == "resident")

    def need_fn(t, resident):
        if resident:
            return _resident_need_bytes(t, E_pad, H, x_isz, o_isz, w_isz)
        return _stream_need_bytes(t, E_pad, th_eff, x_isz, o_isz, w_isz)

    # Row tile: as large as the roofline wants, shrunk to fit the VMEM budget.
    tm_eff = _pick_row_tile(N, tm_target)
    while tm_eff > 8 and need_fn(tm_eff, use_resident) > budget:
        tm_eff = max(8, _round_up(tm_eff // 2, 8))
    if use_resident and residency == "auto" and need_fn(tm_eff, use_resident) > budget:
        use_resident = False   # intermediates don't fit with resident weights -> stream
        tm_eff = _pick_row_tile(N, tm_target)
        while tm_eff > 8 and need_fn(tm_eff, use_resident) > budget:
            tm_eff = max(8, _round_up(tm_eff // 2, 8))

    n_pad = _round_up(N, tm_eff)
    # At least 2 row tiles so the "parallel" axis can shard across TensorCores (v7x megacore).
    if n_pad // tm_eff < 2 and n_pad > 8:
        tm_eff = _round_up((n_pad + 1) // 2, 8)
        n_pad = _round_up(N, tm_eff)

    need = need_fn(tm_eff, use_resident)
    headroom_cap = int(0.8 * vmem_cap)   # leave headroom for compiler-internal scratch
    vmem_limit = min(headroom_cap, max(32 * 1024 * 1024, int(1.5 * need)))

    # ---- operand prep (bf16 activations & weights; f32 biases) ----
    x2d = x.reshape(N, E).astype(matmul_dtype)
    pad_rows, pad_cols = n_pad - N, E_pad - E
    if pad_rows or pad_cols:
        x2d = jnp.pad(x2d, ((0, pad_rows), (0, pad_cols)))

    w1c = w1.astype(matmul_dtype)
    w2c = w2.astype(matmul_dtype)
    b2r = b2.astype(jnp.float32)
    if pad_cols:
        w1c = jnp.pad(w1c, ((0, pad_cols), (0, 0)))
        w2c = jnp.pad(w2c, ((0, 0), (0, pad_cols)))
        b2r = jnp.pad(b2r, ((0, pad_cols),))
    b1r = b1.reshape(1, H).astype(jnp.float32)
    b2r = b2r.reshape(1, E_pad)

    out_dtype = x.dtype

    if use_resident:
        grid = (n_pad // tm_eff,)
        out2d = pl.pallas_call(
            ff_resident_kernel,
            out_shape=jax.ShapeDtypeStruct((n_pad, E_pad), out_dtype),
            grid_spec=pltpu.PrefetchScalarGridSpec(
                num_scalar_prefetch=0,
                grid=grid,
                in_specs=[
                    pl.BlockSpec((tm_eff, E_pad), lambda i: (i, 0)),   # x row tile
                    pl.BlockSpec((E_pad, H), lambda i: (0, 0)),        # W1 (resident)
                    pl.BlockSpec((1, H), lambda i: (0, 0)),            # b1
                    pl.BlockSpec((H, E_pad), lambda i: (0, 0)),        # W2 (resident)
                    pl.BlockSpec((1, E_pad), lambda i: (0, 0)),        # b2
                ],
                out_specs=pl.BlockSpec((tm_eff, E_pad), lambda i: (i, 0)),
            ),
            compiler_params=pltpu.CompilerParams(
                dimension_semantics=("parallel",),
                vmem_limit_bytes=vmem_limit,
            ),
        )(x2d, w1c, b1r, w2c, b2r)
    else:
        grid = (n_pad // tm_eff, H // th_eff)
        out2d = pl.pallas_call(
            ff_stream_kernel,
            out_shape=jax.ShapeDtypeStruct((n_pad, E_pad), out_dtype),
            grid_spec=pltpu.PrefetchScalarGridSpec(
                num_scalar_prefetch=0,
                grid=grid,
                in_specs=[
                    pl.BlockSpec((tm_eff, E_pad), lambda i, j: (i, 0)),   # x row tile
                    pl.BlockSpec((E_pad, th_eff), lambda i, j: (0, j)),   # W1 hidden chunk
                    pl.BlockSpec((1, th_eff), lambda i, j: (0, j)),       # b1 hidden chunk
                    pl.BlockSpec((th_eff, E_pad), lambda i, j: (j, 0)),   # W2 hidden chunk
                    pl.BlockSpec((1, E_pad), lambda i, j: (0, 0)),        # b2
                ],
                out_specs=pl.BlockSpec((tm_eff, E_pad), lambda i, j: (i, 0)),
                scratch_shapes=[pltpu.VMEM((tm_eff, E_pad), jnp.float32)],
            ),
            compiler_params=pltpu.CompilerParams(
                dimension_semantics=("parallel", "arbitrary"),
                vmem_limit_bytes=vmem_limit,
            ),
        )(x2d, w1c, b1r, w2c, b2r)

    if pad_rows or pad_cols:
        out2d = out2d[:N, :E]
    return out2d.reshape(B, S, E)


# ----------------------------- reference / demo -----------------------------

def init_params(key, emb_size, hidden_size):
    # nn.Linear-style init: uniform(-1/sqrt(fan_in), 1/sqrt(fan_in)).
    k1, k2, k3, k4 = jax.random.split(key, 4)
    bound1 = 1.0 / math.sqrt(emb_size)
    bound2 = 1.0 / math.sqrt(hidden_size)
    w1 = jax.random.uniform(k1, (emb_size, hidden_size), jnp.float32, -bound1, bound1)
    b1 = jax.random.uniform(k2, (hidden_size,), jnp.float32, -bound1, bound1)
    w2 = jax.random.uniform(k3, (hidden_size, emb_size), jnp.float32, -bound2, bound2)
    b2 = jax.random.uniform(k4, (emb_size,), jnp.float32, -bound2, bound2)
    return w1, b1, w2, b2


def feedforward_ref(x, w1, b1, w2, b2):
    B, S, E = x.shape
    x2 = x.reshape(-1, E)
    h = jnp.dot(x2, w1, precision=jax.lax.Precision.HIGHEST) + b1
    h = 0.5 * h * (1.0 + jax.lax.erf(h * _INV_SQRT2))
    o = jnp.dot(h, w2, precision=jax.lax.Precision.HIGHEST) + b2
    return o.reshape(B, S, E)


if __name__ == "__main__":
    key = jax.random.PRNGKey(0)
    kx, kp, kp2 = jax.random.split(key, 3)

    batch, seq, emb_size, hidden_size = 2, 8, 32, 64
    x = jax.random.normal(kx, (batch, seq, emb_size), jnp.float32)

    # Test 1: auto path (small model -> weight-resident kernel).
    w1, b1, w2, b2 = init_params(kp, emb_size, hidden_size)
    out = jax.block_until_ready(feedforward(x, w1, b1, w2, b2))
    ref = feedforward_ref(x, w1, b1, w2, b2)
    assert out.shape == ref.shape
    # bf16 MXU operands with f32 accumulation -> relaxed tolerance vs f32 reference.
    assert jnp.allclose(out, ref, atol=3e-2, rtol=3e-2), "mismatch vs reference (resident)"

    # Test 2: force the streaming path with the hidden dim split into chunks.
    hidden2 = 256
    w1b, b1b, w2b, b2b = init_params(kp2, emb_size, hidden2)
    out2 = jax.block_until_ready(
        feedforward(x, w1b, b1b, w2b, b2b, th=128, residency="stream"))
    ref2 = feedforward_ref(x, w1b, b1b, w2b, b2b)
    assert out2.shape == ref2.shape
    assert jnp.allclose(out2, ref2, atol=3e-2, rtol=3e-2), "mismatch vs reference (stream)"

    print("KERNEL_OK")
</pallas_src>

<mosaic_0001>
module attributes {stable_mosaic.version = 11 : i64} {
  func.func @ff_resident_kernel(%arg0: i32, %arg1: memref<8x128xbf16, #tpu.memory_space<vmem>>, %arg2: memref<128x64xbf16, #tpu.memory_space<vmem>>, %arg3: memref<1x64xf32, #tpu.memory_space<vmem>>, %arg4: memref<64x128xbf16, #tpu.memory_space<vmem>>, %arg5: memref<1x128xf32, #tpu.memory_space<vmem>>, %arg6: memref<8x128xf32, #tpu.memory_space<vmem>>) attributes {dimension_semantics = [#tpu.dimension_semantics<parallel>], iteration_bounds = array<i64: 2>, scalar_prefetch = 0 : i64, scratch_operands = 0 : i64, tpu.core_type = #tpu.core_type<tc>, window_params = [{transform_indices = @transform_0, window_bounds = array<i64: 8, 128>}, {pipeline_mode = #tpu.pipeline_mode<synchronous>, transform_indices = @transform_1, window_bounds = array<i64: 128, 64>}, {pipeline_mode = #tpu.pipeline_mode<synchronous>, transform_indices = @transform_2, window_bounds = array<i64: 1, 64>}, {pipeline_mode = #tpu.pipeline_mode<synchronous>, transform_indices = @transform_3, window_bounds = array<i64: 64, 128>}, {pipeline_mode = #tpu.pipeline_mode<synchronous>, transform_indices = @transform_4, window_bounds = array<i64: 1, 128>}, {transform_indices = @transform_5, window_bounds = array<i64: 8, 128>}]} {
    %c0 = arith.constant 0 : index
    %c0_0 = arith.constant 0 : index
    %0 = vector.load %arg1[%c0, %c0_0] : memref<8x128xbf16, #tpu.memory_space<vmem>>, vector<8x128xbf16>
    %c0_1 = arith.constant 0 : index
    %c0_2 = arith.constant 0 : index
    %1 = vector.load %arg2[%c0_1, %c0_2] : memref<128x64xbf16, #tpu.memory_space<vmem>>, vector<128x64xbf16>
    %cst = arith.constant dense<0.000000e+00> : vector<8x64xf32>
    %2 = tpu.matmul %0, %1, %cst {dimension_numbers = #tpu.dot_dimension_numbers<[1], [0], [0], [1], [0, 0, 1, 1], [], []>} : vector<8x128xbf16>, vector<128x64xbf16>, vector<8x64xf32> -> vector<8x64xf32>
    %c0_3 = arith.constant 0 : index
    %c0_4 = arith.constant 0 : index
    %3 = vector.load %arg3[%c0_3, %c0_4] : memref<1x64xf32, #tpu.memory_space<vmem>>, vector<1x64xf32>
    %4 = vector.broadcast %3 : vector<1x64xf32> to vector<8x64xf32>
    %5 = arith.addf %2, %4 : vector<8x64xf32>
    %cst_5 = arith.constant 5.000000e-01 : f32
    %6 = vector.broadcast %cst_5 : f32 to vector<8x64xf32>
    %7 = arith.mulf %6, %5 : vector<8x64xf32>
    %cst_6 = arith.constant 0.707106769 : f32
    %8 = vector.broadcast %cst_6 : f32 to vector<8x64xf32>
    %9 = arith.mulf %5, %8 : vector<8x64xf32>
    %10 = math.erf %9 : vector<8x64xf32>
    %cst_7 = arith.constant 1.000000e+00 : f32
    %11 = vector.broadcast %cst_7 : f32 to vector<8x64xf32>
    %12 = arith.addf %11, %10 : vector<8x64xf32>
    %13 = arith.mulf %7, %12 : vector<8x64xf32>
    %14 = arith.truncf %13 : vector<8x64xf32> to vector<8x64xbf16>
    %c0_8 = arith.constant 0 : index
    %c0_9 = arith.constant 0 : index
    %15 = vector.load %arg4[%c0_8, %c0_9] : memref<64x128xbf16, #tpu.memory_space<vmem>>, vector<64x128xbf16>
    %cst_10 = arith.constant dense<0.000000e+00> : vector<8x128xf32>
    %16 = tpu.matmul %14, %15, %cst_10 {dimension_numbers = #tpu.dot_dimension_numbers<[1], [0], [0], [1], [0, 0, 1, 1], [], []>} : vector<8x64xbf16>, vector<64x128xbf16>, vector<8x128xf32> -> vector<8x128xf32>
    %c0_11 = arith.constant 0 : index
    %c0_12 = arith.constant 0 : index
    %17 = vector.load %arg5[%c0_11, %c0_12] : memref<1x128xf32, #tpu.memory_space<vmem>>, vector<1x128xf32>
    %18 = vector.broadcast %17 : vector<1x128xf32> to vector<8x128xf32>
    %19 = arith.addf %16, %18 : vector<8x128xf32>
    %c0_13 = arith.constant 0 : index
    %c0_14 = arith.constant 0 : index
    %20 = vector.load %arg6[%c0_13, %c0_14] : memref<8x128xf32, #tpu.memory_space<vmem>>, vector<8x128xf32>
    tpu.vector_store %arg6[%c0_13, %c0_14], %19 {strides = array<i32>} : memref<8x128xf32, #tpu.memory_space<vmem>>, vector<8x128xf32>,
    return
  }
  func.func @transform_0(%arg0: i32) -> (i32, i32) {
    %c0_i32 = arith.constant 0 : i32
    %c0_i32_0 = arith.constant 0 : i32
    return %arg0, %c0_i32 : i32, i32
  }
  func.func @transform_1(%arg0: i32) -> (i32, i32) {
    %c0_i32 = arith.constant 0 : i32
    %c0_i32_0 = arith.constant 0 : i32
    %c0_i32_1 = arith.constant 0 : i32
    return %c0_i32, %c0_i32_0 : i32, i32
  }
  func.func @transform_2(%arg0: i32) -> (i32, i32) {
    %c0_i32 = arith.constant 0 : i32
    %c0_i32_0 = arith.constant 0 : i32
    %c0_i32_1 = arith.constant 0 : i32
    return %c0_i32, %c0_i32_0 : i32, i32
  }
  func.func @transform_3(%arg0: i32) -> (i32, i32) {
    %c0_i32 = arith.constant 0 : i32
    %c0_i32_0 = arith.constant 0 : i32
    %c0_i32_1 = arith.constant 0 : i32
    return %c0_i32, %c0_i32_0 : i32, i32
  }
  func.func @transform_4(%arg0: i32) -> (i32, i32) {
    %c0_i32 = arith.constant 0 : i32
    %c0_i32_0 = arith.constant 0 : i32
    %c0_i32_1 = arith.constant 0 : i32
    return %c0_i32, %c0_i32_0 : i32, i32
  }
  func.func @transform_5(%arg0: i32) -> (i32, i32) {
    %c0_i32 = arith.constant 0 : i32
    %c0_i32_0 = arith.constant 0 : i32
    return %arg0, %c0_i32 : i32, i32
  }
}

</mosaic_0001>

<llo_original>
// kernel: tpu_custom_call.1
$region0: #{tpu_custom_call.1}
  #allocation0 [shape = 'u32[]', space=smem, size = 0x4, offset = 0x4, fixed_abs, tag = 'smem constant byte address 0x4 - core index']
  #allocation1 [shape = 'u32[72,128]{1,0:T(1,128)}', space=vmem, size = 0x9000, scoped, tag = 'internal scratch']
  %s0 = inlined_call_operand.vmem [shape: bf16[16,128], index: 0, kind: input, shape index: {}]
  %s1 = inlined_call_operand.vmem [shape: bf16[128,64], index: 1, kind: input, shape index: {}]
  %s2 = inlined_call_operand.vmem [shape: f32[1,64], index: 2, kind: input, shape index: {}]
  %s3 = inlined_call_operand.vmem [shape: bf16[64,128], index: 3, kind: input, shape index: {}]
  %s4 = inlined_call_operand.vmem [shape: f32[1,128], index: 4, kind: input, shape index: {}]
  %s5 = inlined_call_operand.hbm [shape: f32[16,128], index: 5, kind: output, shape index: {}]
  %s6 = sld [smem:[#allocation0]]
  $region53: #{tpu_custom_call.1} parent=0
    _
  %s8 = ssub.s32 1, %s6
  %s9 = scalar_select 0, %s8, %s6
  $region1: #{tpu_custom_call.1} parent=0
    #allocation2 [shape = 'u8[8192]{0}', space=vmem, size = 0x2000, scoped, tag = 'output window, operand 0']
    #allocation3 [shape = 's32[2]{0}', space=sflag, size = 0x8, scoped, tag = 'scoped memory for tpu_custom_call.1']
    %10 = vsyncpa [#allocation3], 0
    %s11 = scalar_lea.sflag [#allocation3], 1
    %12 = vsyncpa %s11, 0
    loop: start=0, step=1, limit=4
    $region2: #{tpu_custom_call.1} parent=1 // loop_pre_header
      _
    $region3: #{tpu_custom_call.1} parent=1 // loop_header
      %s14 = sphi 0, %s18
      %p15 = scmp.ge.s32.totalorder %s14, 4
      %s24 = sphi 0, %s26
      %s27 = sphi 0, %s24
      %s28 = sphi 0, %s27
      %s44 = sphi 0, %s28
      %s48 = sphi 0, %s48
      %s50 = sphi 0, %s48
      %s51 = sphi 0, %s50
      %s65 = sphi 0, %s51
      %s69 = sphi 0, %s69
      %s71 = sphi 0, %s69
      %s72 = sphi 0, %s71
      %s86 = sphi 0, %s72
      %s90 = sphi 0, %s90
      %s92 = sphi 0, %s90
      %s93 = sphi 0, %s92
      %s107 = sphi 0, %s93
      %s111 = sphi 0, %s111
      %s113 = sphi 0, %s111
      %s114 = sphi 0, %s113
      %s128 = sphi 0, %s114
      %s134 = sphi 0, %s136
      %s137 = sphi 0, %s134
      %s138 = sphi 0, %s137
      %s154 = sphi 0, %s138
    $region4: #{tpu_custom_call.1} parent=1 // loop_header_branch
      %17 = sbr.rel (%p15) target = $region8
    $region5: #{tpu_custom_call.1} parent=1 // loop_body
      %s19 = ssub.s32 %s14, 1
      %s20 = ssub.s32 %s14, 2
      %s21 = sadd.s32 %s14, 1
      %s22 = ssub.s32 %s14, %s21
      %p23 = scmp.eq.s32.totalorder %s22, 0
      %s25 = sadd.s32 %s24, 1
      %s26 = scalar_select %p23, %s24, %s25
      %p29 = pneg %p23
      %p30 = scmp.eq.s32.totalorder %s14, 1
      %p31 = por %p29, %p30
      %p32 = scmp.ne.s32.totalorder %s24, %s27
      %p33 = scmp.eq.s32.totalorder %s14, 0
      %p34 = por %p32, %p33
      %p35 = scmp.ne.s32.totalorder %s24, %s27
      %p36 = scmp.eq.s32.totalorder %s19, 1
      %p37 = por %p35, %p36
      %p38 = scmp.ne.s32.totalorder %s27, %s28
      %p39 = scmp.eq.s32.totalorder %s19, 0
      %p40 = por %p38, %p39
      %p41 = scmp.ne.s32.totalorder %s27, %s28
      %p42 = scmp.eq.s32.totalorder %s20, 1
      %p43 = por %p41, %p42
      %p45 = scmp.ne.s32.totalorder %s28, %s44
      %p46 = scmp.eq.s32.totalorder %s20, 0
      %p47 = por %p45, %p46
      %s49 = sadd.s32 %s48, 1
      %p52 = scmp.eq.s32.totalorder %s14, 1
      %p53 = scmp.ne.s32.totalorder %s48, %s50
      %p54 = scmp.eq.s32.totalorder %s14, 0
      %p55 = por %p53, %p54
      %p56 = scmp.ne.s32.totalorder %s48, %s50
      %p57 = scmp.eq.s32.totalorder %s19, 1
      %p58 = por %p56, %p57
      %p59 = scmp.ne.s32.totalorder %s50, %s51
      %p60 = scmp.eq.s32.totalorder %s19, 0
      %p61 = por %p59, %p60
      %p62 = scmp.ne.s32.totalorder %s50, %s51
      %p63 = scmp.eq.s32.totalorder %s20, 1
      %p64 = por %p62, %p63
      %p66 = scmp.ne.s32.totalorder %s51, %s65
      %p67 = scmp.eq.s32.totalorder %s20, 0
      %p68 = por %p66, %p67
      %s70 = sadd.s32 %s69, 1
      %p73 = scmp.eq.s32.totalorder %s14, 1
      %p74 = scmp.ne.s32.totalorder %s69, %s71
      %p75 = scmp.eq.s32.totalorder %s14, 0
      %p76 = por %p74, %p75
      %p77 = scmp.ne.s32.totalorder %s69, %s71
      %p78 = scmp.eq.s32.totalorder %s19, 1
      %p79 = por %p77, %p78
      %p80 = scmp.ne.s32.totalorder %s71, %s72
      %p81 = scmp.eq.s32.totalorder %s19, 0
      %p82 = por %p80, %p81
      %p83 = scmp.ne.s32.totalorder %s71, %s72
      %p84 = scmp.eq.s32.totalorder %s20, 1
      %p85 = por %p83, %p84
      %p87 = scmp.ne.s32.totalorder %s72, %s86
      %p88 = scmp.eq.s32.totalorder %s20, 0
      %p89 = por %p87, %p88
      %s91 = sadd.s32 %s90, 1
      %p94 = scmp.eq.s32.totalorder %s14, 1
      %p95 = scmp.ne.s32.totalorder %s90, %s92
      %p96 = scmp.eq.s32.totalorder %s14, 0
      %p97 = por %p95, %p96
      %p98 = scmp.ne.s32.totalorder %s90, %s92
      %p99 = scmp.eq.s32.totalorder %s19, 1
      %p100 = por %p98, %p99
      %p101 = scmp.ne.s32.totalorder %s92, %s93
      %p102 = scmp.eq.s32.totalorder %s19, 0
      %p103 = por %p101, %p102
      %p104 = scmp.ne.s32.totalorder %s92, %s93
      %p105 = scmp.eq.s32.totalorder %s20, 1
      %p106 = por %p104, %p105
      %p108 = scmp.ne.s32.totalorder %s93, %s107
      %p109 = scmp.eq.s32.totalorder %s20, 0
      %p110 = por %p108, %p109
      %s112 = sadd.s32 %s111, 1
      %p115 = scmp.eq.s32.totalorder %s14, 1
      %p116 = scmp.ne.s32.totalorder %s111, %s113
      %p117 = scmp.eq.s32.totalorder %s14, 0
      %p118 = por %p116, %p117
      %p119 = scmp.ne.s32.totalorder %s111, %s113
      %p120 = scmp.eq.s32.totalorder %s19, 1
      %p121 = por %p119, %p120
      %p122 = scmp.ne.s32.totalorder %s113, %s114
      %p123 = scmp.eq.s32.totalorder %s19, 0
      %p124 = por %p122, %p123
      %p125 = scmp.ne.s32.totalorder %s113, %s114
      %p126 = scmp.eq.s32.totalorder %s20, 1
      %p127 = por %p125, %p126
      %p129 = scmp.ne.s32.totalorder %s114, %s128
      %p130 = scmp.eq.s32.totalorder %s20, 0
      %p131 = por %p129, %p130
      %s132 = ssub.s32 %s14, %s21
      %p133 = scmp.eq.s32.totalorder %s132, 0
      %s135 = sadd.s32 %s134, 1
      %s136 = scalar_select %p133, %s134, %s135
      %p139 = pneg %p133
      %p140 = scmp.eq.s32.totalorder %s14, 1
      %p141 = por %p139, %p140
      %p142 = scmp.ne.s32.totalorder %s134, %s137
      %p143 = scmp.eq.s32.totalorder %s14, 0
      %p144 = por %p142, %p143
      %p145 = scmp.ne.s32.totalorder %s134, %s137
      %p146 = scmp.eq.s32.totalorder %s19, 1
      %p147 = por %p145, %p146
      %p148 = scmp.ne.s32.totalorder %s137, %s138
      %p149 = scmp.eq.s32.totalorder %s19, 0
      %p150 = por %p148, %p149
      %p151 = scmp.ne.s32.totalorder %s137, %s138
      %p152 = scmp.eq.s32.totalorder %s20, 1
      %p153 = por %p151, %p152
      %p155 = scmp.ne.s32.totalorder %s138, %s154
      %p156 = scmp.eq.s32.totalorder %s20, 0
      %p157 = por %p155, %p156
      %p158 = scmp.le.s32.totalorder 1, %s14
      %p159 = scmp.lt.s32.totalorder %s14, 3
      %p160 = pnand %p158, %p159
      %p161 = pneg %p160
      // Predicated region
      $region9: #{tpu_custom_call.1} parent=5 // pred_check
        _
      $region10: #{tpu_custom_call.1} parent=5 // pred_check_branch
        %163 = sbr.rel (%p160) target = $region12
      $region11: #{tpu_custom_call.1} parent=5 // pred_region
        %s164 = ssub.s32 %s14, 1
        // Predicated region
        $region13: #{tpu_custom_call.1} parent=11 // pred_check
          %p165 = pneg %p61
        $region14: #{tpu_custom_call.1} parent=11 // pred_check_branch
          %167 = sbr.rel (%p165) target = $region16
        $region15: #{tpu_custom_call.1} parent=11 // pred_region
          _
        $region16: #{tpu_custom_call.1} parent=11 // pred_fallthru
          _
        // Predicated region
        $region17: #{tpu_custom_call.1} parent=11 // pred_check
          %p168 = pneg %p82
        $region18: #{tpu_custom_call.1} parent=11 // pred_check_branch
          %170 = sbr.rel (%p168) target = $region20
        $region19: #{tpu_custom_call.1} parent=11 // pred_region
          _
        $region20: #{tpu_custom_call.1} parent=11 // pred_fallthru
          _
        // Predicated region
        $region21: #{tpu_custom_call.1} parent=11 // pred_check
          %p171 = pneg %p103
        $region22: #{tpu_custom_call.1} parent=11 // pred_check_branch
          %173 = sbr.rel (%p171) target = $region24
        $region23: #{tpu_custom_call.1} parent=11 // pred_region
          _
        $region24: #{tpu_custom_call.1} parent=11 // pred_fallthru
          _
        // Predicated region
        $region25: #{tpu_custom_call.1} parent=11 // pred_check
          %p174 = pneg %p124
        $region26: #{tpu_custom_call.1} parent=11 // pred_check_branch
          %176 = sbr.rel (%p174) target = $region28
        $region27: #{tpu_custom_call.1} parent=11 // pred_region
          _
        $region28: #{tpu_custom_call.1} parent=11 // pred_fallthru
          _
      $region12: #{tpu_custom_call.1} parent=5 // pred_fallthru
        _
      %p177 = scmp.lt.s32.totalorder %s14, 2
      // Predicated region
      $region29: #{tpu_custom_call.1} parent=5 // pred_check
        %p178 = pneg %p177
      $region30: #{tpu_custom_call.1} parent=5 // pred_check_branch
        %180 = sbr.rel (%p178) target = $region32
      $region31: #{tpu_custom_call.1} parent=5 // pred_region
        // Predicated region
        $region33: #{tpu_custom_call.1} parent=31 // pred_check
          %p181 = pneg %p34
        $region34: #{tpu_custom_call.1} parent=31 // pred_check_branch
          %183 = sbr.rel (%p181) target = $region36
        $region35: #{tpu_custom_call.1} parent=31 // pred_region
          %p184 = scmp.lt.s32.totalorder %s14, 1
          %s185 = scalar_select %p184, %s14, 1
          %s186 = smul.addr %s185, 4
          %s187 = scalar_lea.vmem %s0, %s186
        $region36: #{tpu_custom_call.1} parent=31 // pred_fallthru
          _
      $region32: #{tpu_custom_call.1} parent=5 // pred_fallthru
        _
      %p188 = scmp.le.s32.totalorder 1, %s14
      %p189 = scmp.lt.s32.totalorder %s14, 3
      %p190 = pnand %p188, %p189
      %p191 = pneg %p190
      // Predicated region
      $region37: #{tpu_custom_call.1} parent=5 // pred_check
        _
      $region38: #{tpu_custom_call.1} parent=5 // pred_check_branch
        %193 = sbr.rel (%p190) target = $region40
      $region39: #{tpu_custom_call.1} parent=5 // pred_region
        %s194 = ssub.s32 %s14, 1
        %p195 = scmp.lt.s32.totalorder %s19, 1
        %s196 = scalar_select %p195, %s19, 1
        %s197 = smul.addr %s196, 4
        %s198 = scalar_lea.vmem %s0, %s197
        %p199 = pneg %p40
        %p200 = pneg %p37
        %p201 = pneg %p61
        %p202 = pneg %p58
        %p203 = pneg %p82
        %p204 = pneg %p79
        %p205 = pneg %p103
        %p206 = pneg %p100
        %p207 = pneg %p124
        %p208 = pneg %p121
        %p209 = pneg %p150
        %p210 = pneg %p147
        %s211 = sand.u32 %s137, 1
        %s212 = scalar_lea.sflag [#allocation3], %s211
        %s213 = sand.u32 %s137, 1
        %s214 = smul.addr %s213, 8
        %s215 = scalar_lea.vmem [#allocation2], %s214
        %p216 = scmp.lt.s32.totalorder %s19, 1
        %s217 = scalar_select %p216, %s19, 1
        %s218 = smul.addr %s217, 4
        %s219 = scalar_lea.vmem %s0, %s218
        %v221 = vld [vmem:[%s219] sm:$0xf]
        %v222 = vld [vmem:[%s1] sm:$0xf]
        %v223 = vld [vmem:[%s1 + $0x4] sm:$0xf]
        %v224 = vld [vmem:[%s1 + $0x8] sm:$0xf]
        %v225 = vld [vmem:[%s1 + $0xc] sm:$0xf]
        %v226 = vld [vmem:[%s1 + $0x10] sm:$0xf]
        %v227 = vld [vmem:[%s1 + $0x14] sm:$0xf]
        %v228 = vld [vmem:[%s1 + $0x18] sm:$0xf]
        %v229 = vld [vmem:[%s1 + $0x1c] sm:$0xf]
        %v230 = vld [vmem:[%s1 + $0x20] sm:$0xf]
        %v231 = vld [vmem:[%s1 + $0x24] sm:$0xf]
        %v232 = vld [vmem:[%s1 + $0x28] sm:$0xf]
        %v233 = vld [vmem:[%s1 + $0x2c] sm:$0xf]
        %v234 = vld [vmem:[%s1 + $0x30] sm:$0xf]
        %v235 = vld [vmem:[%s1 + $0x34] sm:$0xf]
        %v236 = vld [vmem:[%s1 + $0x38] sm:$0xf]
        %v237 = vld [vmem:[%s1 + $0x3c] sm:$0xf]
        %v238 = vld [vmem:[%s2] sm:$0x1]
        %v240 = vperm.slane %v238, 0
        %v258 = vunpack.c.l.b16 %v222
        %v259 = vunpack.c.l.b16 %v223
        %v260 = vunpack.c.l.b16 %v224
        %v261 = vunpack.c.l.b16 %v225
        %v262 = vunpack.c.l.b16 %v226
        %v263 = vunpack.c.l.b16 %v227
        %v264 = vunpack.c.l.b16 %v228
        %v265 = vunpack.c.l.b16 %v229
        %v266 = vunpack.c.l.b16 %v230
        %v267 = vunpack.c.l.b16 %v231
        %v268 = vunpack.c.l.b16 %v232
        %v269 = vunpack.c.l.b16 %v233
        %v270 = vunpack.c.l.b16 %v234
        %v271 = vunpack.c.l.b16 %v235
        %v272 = vunpack.c.l.b16 %v236
        %v273 = vunpack.c.l.b16 %v237
        %v274 = vpack.c.b16 %v259, %v258
        %v275 = vpack.c.b16 %v261, %v260
        %v276 = vpack.c.b16 %v263, %v262
        %v277 = vpack.c.b16 %v265, %v264
        %v278 = vpack.c.b16 %v267, %v266
        %v279 = vpack.c.b16 %v269, %v268
        %v280 = vpack.c.b16 %v271, %v270
        %v281 = vpack.c.b16 %v273, %v272
        %290 = vmatpush.bf16.msra.mxu0 %v281
        %291 = vmatpush.bf16.msra.mxu0 %v280
        %292 = vmatpush.bf16.msra.mxu0 %v279
        %293 = vmatpush.bf16.msra.mxu0 %v278
        %294 = vmatpush.bf16.msra.mxu0 %v277
        %295 = vmatpush.bf16.msra.mxu0 %v276
        %296 = vmatpush.bf16.msra.mxu0 %v275
        %297 = vmatpush.bf16.msra.mxu0 %v274
        %298 = vmatmul.bf16.gmra.mxu0 %v221
        %v299 = vpop.f32.mrf.mxu0
        %v300 = vadd.f32 %v240, %v299
        %v301 = vpop.f32.mrf.mxu0
        %302 = vdwg.mxu0
        %v303 = vmul.f32 %v300, 0.5
        %v304 = vmul.f32 %v300, 0.70710677
        %v305 = vmul.f32 %v304, %v304
        %v306 = vmin.f32 16.0, %v305
        %v307 = vmul.f32 %v306, 2.1237322e-06
        %v308 = vadd.f32 %v307, 0.00028619796
        %v309 = vmul.f32 %v306, %v308
        %v310 = vadd.f32 %v309, 0.0036580483
        %v311 = vmul.f32 %v306, %v310
        %v312 = vadd.f32 %v311, 0.05243302
        %v313 = vmul.f32 %v306, %v312
        %v314 = vadd.f32 %v313, 0.18741608
        %v315 = vmul.f32 %v306, %v314
        %v316 = vadd.f32 %v315, 1.1283791
        %v317 = vmul.f32 %v304, %v316
        %v318 = vmul.f32 %v306, 3.8918573e-05
        %v319 = vadd.f32 %v318, 0.001143296
        %v320 = vmul.f32 %v306, %v319
        %v321 = vadd.f32 %v320, 0.014752088
        %v322 = vmul.f32 %v306, %v321
        %v323 = vadd.f32 %v322, 0.112945676
        %v324 = vmul.f32 %v306, %v323
        %v325 = vadd.f32 %v324, 0.4994258
        %v326 = vmul.f32 %v306, %v325
        %v327 = vadd.f32 %v326, 1.0
        %v328 = vrcp.pop %v327
        %v329 = vmul.f32 %v327, %v328
        %v330 = vsub.f32 1.0, %v329
        %v331 = vmul.f32 %v328, %v330
        %v332 = vadd.f32 %v328, %v331
        %vm333 = vweird.f32 %v327
        %vm334 = vweird.f32 %v328
        %vm335 = vmor %vm333, %vm334
        %v336 = vsel %vm335, %v328, %v332
        %v337 = vand.u32 2147483647, %v327
        %vm338 = vcmp.eq.f32.partialorder %v337, 8.507059e+37
        %v339 = vand.u32 %v327, 2147483648
        %v340 = vor.u32 1.1754944e-38, %v339
        %v341 = vsel %vm338, %v340, %v336
        %v342 = vmul.f32 %v317, %v341
        %v343 = vmin.f32 %v342, 1.0
        %v344 = vmax.f32 %v343, -1.0
        %v345 = vadd.f32 %v344, 1.0
        %v346 = vmul.f32 %v303, %v345
        %v347 = vpack.c.bf16 %v346, %v346
        %v348 = vld [vmem:[%s3] sm:$0xf]
        %v349 = vld [vmem:[%s3 + $0x4] sm:$0xf]
        %v350 = vld [vmem:[%s3 + $0x8] sm:$0xf]
        %v351 = vld [vmem:[%s3 + $0xc] sm:$0xf]
        %v352 = vld [vmem:[%s3 + $0x10] sm:$0xf]
        %v353 = vld [vmem:[%s3 + $0x14] sm:$0xf]
        %v354 = vld [vmem:[%s3 + $0x18] sm:$0xf]
        %v355 = vld [vmem:[%s3 + $0x1c] sm:$0xf]
        %v356 = vld [vmem:[%s4] sm:$0x1]
        %v358 = vperm.slane %v356, 0
        %v368 = vunpack.c.l.b16 %v348
        %v369 = vunpack.c.l.b16 %v349
        %v370 = vunpack.c.l.b16 %v350
        %v371 = vunpack.c.l.b16 %v351
        %v372 = vunpack.c.l.b16 %v352
        %v373 = vunpack.c.l.b16 %v353
        %v374 = vunpack.c.l.b16 %v354
        %v375 = vunpack.c.l.b16 %v355
        %v376 = vpack.c.b16 %v369, %v368
        %v377 = vpack.c.b16 %v371, %v370
        %v378 = vpack.c.b16 %v373, %v372
        %v379 = vpack.c.b16 %v375, %v374
        %vm384 = vcmask 523264
        %v386 = vsel %vm384, %v347, 0
        %388 = vmatpush.bf16.msra.mxu0 0
        %389 = vmatpush.bf16.msra.mxu0 0
        %390 = vmatpush.bf16.msra.mxu0 0
        %391 = vmatpush.bf16.msra.mxu0 0
        %392 = vmatpush.bf16.msra.mxu0 %v379
        %393 = vmatpush.bf16.msra.mxu0 %v378
        %394 = vmatpush.bf16.msra.mxu0 %v377
        %395 = vmatpush.bf16.msra.mxu0 %v376
        %396 = vmatmul.bf16.gmra.mxu0 %v386
        %v397 = vpop.f32.mrf.mxu0
        %v398 = vadd.f32 %v358, %v397
        %v399 = vpop.f32.mrf.mxu0
        %400 = vdwg.mxu0
        %401 = vst [vmem:[%s215] sm:$0xff] %v398
        %s402 = sand.u32 %s137, 1
        %s403 = scalar_lea.sflag [#allocation3], %s402
        %s404 = sand.u32 %s137, 1
        %s405 = smul.addr %s404, 8
        %s406 = scalar_lea.vmem [#allocation2], %s405
        // Predicated region
        $region41: #{tpu_custom_call.1} parent=39 // pred_check
          %p407 = pneg %p147
        $region42: #{tpu_custom_call.1} parent=39 // pred_check_branch
          %409 = sbr.rel (%p407) target = $region44
        $region43: #{tpu_custom_call.1} parent=39 // pred_region
          %411 = vsyncadd %s403, 0
          %s412 = smul.addr %s19, 8
          %s413 = scalar_lea.hbm %s5, %s412
          %s415 = sshll.u32 %s406, 4
          %s416 = int_to_ptr.vmem [resolvable:$true] %s415
          %s417 = sshll.u32 %s413, 4
          %s418 = int_to_ptr.hbm [resolvable:$true] %s417
          %420 = dma.vmem_to_hbm [thread:$0]  %s416, 128, %s418, %s403
        $region44: #{tpu_custom_call.1} parent=39 // pred_fallthru
          _
      $region40: #{tpu_custom_call.1} parent=5 // pred_fallthru
        _
      %p421 = scmp.le.s32.totalorder 2, %s14
      // Predicated region
      $region45: #{tpu_custom_call.1} parent=5 // pred_check
        %p422 = pneg %p421
      $region46: #{tpu_custom_call.1} parent=5 // pred_check_branch
        %424 = sbr.rel (%p422) target = $region48
      $region47: #{tpu_custom_call.1} parent=5 // pred_region
        %s425 = ssub.s32 %s14, 2
        // Predicated region
        $region49: #{tpu_custom_call.1} parent=47 // pred_check
          %p426 = pneg %p153
        $region50: #{tpu_custom_call.1} parent=47 // pred_check_branch
          %428 = sbr.rel (%p426) target = $region52
        $region51: #{tpu_custom_call.1} parent=47 // pred_region
          %s429 = sand.u32 %s138, 1
          %s430 = scalar_lea.sflag [#allocation3], %s429
          %s431 = sand.u32 %s138, 1
          %s432 = smul.addr %s431, 8
          %s433 = scalar_lea.vmem [#allocation2], %s432
          %435 = dma.done %s430, 128
        $region52: #{tpu_custom_call.1} parent=47 // pred_fallthru
          _
      $region48: #{tpu_custom_call.1} parent=5 // pred_fallthru
        _
    $region6: #{tpu_custom_call.1} parent=1 // loop_footer
      %s18 = sadd.s32 1, %s14
    $region7: #{tpu_custom_call.1} parent=1 // loop_footer_branch
      %13 = sbr.rel target = $region3
    $region8: #{tpu_custom_call.1} parent=1 // loop_exit
      _
    %436 = vsyncpa [#allocation3], 1
    %s437 = scalar_lea.sflag [#allocation3], 1
    %438 = vsyncpa %s437, 1

</llo_original>
